<compile_context>
chip_gen: v7x
topology: tpu7x:2x2x1
jax: 0.10.0
libtpu: 0.0.40
codegen_flags: <defaults>
</compile_context>

<pallas_src>
import jax
import jax.numpy as jnp
from jax import lax
from jax.experimental import pallas as pl
from jax.experimental.pallas import tpu as pltpu


# ---------------------------------------------------------------------------
# Kernel
# ---------------------------------------------------------------------------

def _wip_pairs_kernel(bi_ref, bj_ref, x_row_ref, x_col_ref, w_ref, o_ref):
    """One (row-block, col-block) pair of the weighted Gram matrix.

    grid = (pair, k):
      pair : linearized upper-triangular block pair (bi <= bj)   ["parallel"]
      k    : feature (reduction) block, last                     ["arbitrary"]

      x_row_ref: (tb, tk)  rows of x for block bi
      x_col_ref: (tb, tk)  rows of x for block bj
      w_ref:     (1, tk)   feature weights
      o_ref:     (tb, tb)  output block (bi, bj); stays resident across k and
                           is accumulated in place in f32 (no scratch needed).
    """
    k = pl.program_id(1)

    xw = x_row_ref[...] * w_ref[...]
    # Contract the LAST dim of both operands: (x_row*w) @ x_col.T without an
    # explicit transpose (the standard q @ k^T pattern on the MXU).
    prod = lax.dot_general(
        xw, x_col_ref[...],
        dimension_numbers=(((1,), (1,)), ((), ())),
        preferred_element_type=jnp.float32,
    )
    # TODO(synk): optional bf16 cast of xw / x_col (keeping f32 accumulation)
    # would give a large MXU speedup but changes numerics vs the f32 reference.

    @pl.when(k == 0)
    def _():
        o_ref[...] = prod

    @pl.when(k != 0)
    def _():
        o_ref[...] += prod


# ---------------------------------------------------------------------------
# Tile planning (generation aware)
# ---------------------------------------------------------------------------

_ITEM = 4  # float32 bytes


def _round_up(x, m):
    return ((x + m - 1) // m) * m


def _vmem_capacity_bytes():
    """Physical VMEM per TensorCore, with a conservative (v7x-sized) fallback."""
    try:
        info = pltpu.get_tpu_info()
        cap = getattr(info, "vmem_capacity_bytes", None)
        if cap:
            return int(cap)
    except Exception:
        pass
    return 64 * 1024 * 1024


def _vmem_bytes(tb, tk):
    # double-buffered row / col / weight inputs + double-buffered output block
    words = 2 * tb * tk + 2 * tb * tk + 2 * tk + 2 * tb * tb
    return words * _ITEM


def _choose_tb(N, cap):
    """Square, lane-dense output block edge.

    Heuristic trade-off: more (smaller) blocks => bigger symmetry savings and
    v7x megacore coverage; fewer (bigger) blocks => higher arithmetic intensity
    so v5e/v6e stay off the HBM roofline at f32 MXU rates.  The chip is proxied
    by its VMEM capacity (v7x has 64 MiB, v5e/v6e have 128 MiB).
    """
    if N <= 128:
        return N                       # single block; also covers tiny N
    small_vmem = cap < (96 * 1024 * 1024)     # v7x-like: fast HBM, 2 cores
    if small_vmem:
        return 128 if N <= 1024 else 256
    if N <= 384:
        return 128
    if N <= 896:
        return 256
    return 512


def _choose_tk(tb, F, budget, block_f):
    if block_f is not None:
        tk = int(block_f)
        if tk != F and tk % 128 != 0:
            tk = _round_up(tk, 128)    # keep feature blocks lane-divisible
        return min(tk, _round_up(F, 128))
    if _vmem_bytes(tb, F) <= budget:
        return F                       # full feature axis resident, no K loop
    for tk in (4096, 2048, 1024, 512, 256):
        if tk < F and _vmem_bytes(tb, tk) <= budget:
            return tk
    return 128


# ---------------------------------------------------------------------------
# Wrapper
# ---------------------------------------------------------------------------

def weighted_innerprod(x, ww, *, block_f=None):
    """Pallas TPU implementation of Weighted_InnerProd.forward.

    Returns (x @ diag(ww) @ x.T, ww).
    """
    x = jnp.asarray(x, jnp.float32)
    ww = jnp.asarray(ww, jnp.float32)
    N, F = x.shape

    cap = _vmem_capacity_bytes()
    budget = int(0.70 * cap)

    tb = _choose_tb(N, cap)
    tk = _choose_tk(tb, F, budget, block_f)

    # Zero-pad the feature axis when it has to be tiled: zero-padded features
    # contribute exactly 0 to the inner product, so this is free and correct.
    if tk != F:
        F_pad = _round_up(F, tk)
        x_in = jnp.pad(x, ((0, 0), (0, F_pad - F))) if F_pad != F else x
        w_in = jnp.pad(ww, (0, F_pad - F)) if F_pad != F else ww
    else:
        F_pad, x_in, w_in = F, x, ww
    w2d = w_in.reshape(1, F_pad)

    nb = -(-N // tb)                   # row/col block count
    nk = F_pad // tk                   # reduction block count

    # Gram symmetry: only upper-triangular block pairs (bj >= bi) are computed.
    pairs = [(i, j) for i in range(nb) for j in range(i, nb)]
    bi_tab = jnp.asarray([p[0] for p in pairs], dtype=jnp.int32)
    bj_tab = jnp.asarray([p[1] for p in pairs], dtype=jnp.int32)

    est = _vmem_bytes(tb, tk)
    compiler_kwargs = {}
    if est > 12 * 1024 * 1024:
        # ~80% of physical VMEM: exploits v5e/v6e's 128 MiB, keeps headroom on v7x.
        compiler_kwargs["vmem_limit_bytes"] = int(min(0.80 * cap, est + (16 << 20)))

    out_raw = pl.pallas_call(
        _wip_pairs_kernel,
        out_shape=jax.ShapeDtypeStruct((N, N), jnp.float32),
        grid_spec=pltpu.PrefetchScalarGridSpec(
            num_scalar_prefetch=2,                 # bi table, bj table (SMEM)
            grid=(len(pairs), nk),
            in_specs=[
                pl.BlockSpec((tb, tk), lambda p, k, bi, bj: (bi[p], k)),  # row blk
                pl.BlockSpec((tb, tk), lambda p, k, bi, bj: (bj[p], k)),  # col blk
                pl.BlockSpec((1, tk), lambda p, k, bi, bj: (0, k)),       # weights
            ],
            out_specs=pl.BlockSpec((tb, tb), lambda p, k, bi, bj: (bi[p], bj[p])),
        ),
        compiler_params=pltpu.CompilerParams(
            # pair axis: independent output blocks -> shardable across v7x's two
            # TensorCores; k axis: in-place accumulation -> must stay sequential.
            dimension_semantics=("parallel", "arbitrary"),
            **compiler_kwargs,
        ),
    )(bi_tab, bj_tab, x_in, x_in, w2d)

    if nb > 1:
        # Mirror the computed upper-triangular blocks into the (never written)
        # lower triangle: one cheap N^2 XLA pass vs the saved N^2*F/2 MACs.
        rb = jnp.arange(N, dtype=jnp.int32) // tb
        upper = rb[:, None] <= rb[None, :]
        out = jnp.where(upper, out_raw, out_raw.T)
    else:
        out = out_raw

    return out, ww


# ---------------------------------------------------------------------------
# Self-test
# ---------------------------------------------------------------------------

if __name__ == "__main__":
    key = jax.random.PRNGKey(0)
    k_x, k_w, k_x2, k_w2 = jax.random.split(key, 4)

    # Small shapes consistent with the module: 8 samples, 32 input features.
    N, F = 8, 32
    x = jax.random.normal(k_x, (N, F), dtype=jnp.float32)
    ww = jax.random.uniform(k_w, (F,), dtype=jnp.float32)   # ~ torch.rand init

    inner_product, ww_out = weighted_innerprod(x, ww)
    jax.block_until_ready(inner_product)
    jax.block_until_ready(ww_out)

    ref = jnp.einsum("nf,mf->nm", x * ww[None, :], x,
                     precision=jax.lax.Precision.HIGHEST)
    assert inner_product.shape == (N, N)
    assert ww_out.shape == (F,)
    assert jnp.allclose(inner_product, ref, atol=1e-2, rtol=1e-2), \
        float(jnp.max(jnp.abs(inner_product - ref)))

    # Larger test: multi-block symmetric grid (mirror pass), ragged N edge,
    # and a forced K-tiled reduction over the feature axis.
    N2, F2 = 200, 384
    x2 = jax.random.normal(k_x2, (N2, F2), dtype=jnp.float32)
    ww2 = jax.random.uniform(k_w2, (F2,), dtype=jnp.float32)
    ip2, _ = weighted_innerprod(x2, ww2, block_f=128)
    jax.block_until_ready(ip2)
    ref2 = jnp.einsum("nf,mf->nm", x2 * ww2[None, :], x2,
                      precision=jax.lax.Precision.HIGHEST)
    assert ip2.shape == (N2, N2)
    assert jnp.allclose(ip2, ref2, atol=1e-2, rtol=1e-2), \
        float(jnp.max(jnp.abs(ip2 - ref2)))

    print("KERNEL_OK")
</pallas_src>

<mosaic_0001>
module attributes {stable_mosaic.version = 11 : i64} {
  func.func @_wip_pairs_kernel(%arg0: i32, %arg1: i32, %arg2: memref<1xi32, #tpu.memory_space<smem>>, %arg3: memref<1xi32, #tpu.memory_space<smem>>, %arg4: memref<8x32xf32, #tpu.memory_space<vmem>>, %arg5: memref<8x32xf32, #tpu.memory_space<vmem>>, %arg6: memref<1x32xf32, #tpu.memory_space<vmem>>, %arg7: memref<8x8xf32, #tpu.memory_space<vmem>>) attributes {dimension_semantics = [#tpu.dimension_semantics<parallel>, #tpu.dimension_semantics<arbitrary>], iteration_bounds = array<i64: 1, 1>, scalar_prefetch = 2 : i64, scratch_operands = 0 : i64, tpu.core_type = #tpu.core_type<tc>, window_params = [{transform_indices = @transform_0, window_bounds = array<i64: 8, 32>}, {transform_indices = @transform_1, window_bounds = array<i64: 8, 32>}, {transform_indices = @transform_2, window_bounds = array<i64: 1, 32>}, {transform_indices = @transform_3, window_bounds = array<i64: 8, 8>}]} {
    %c0 = arith.constant 0 : index
    %c0_0 = arith.constant 0 : index
    %0 = vector.load %arg4[%c0, %c0_0] : memref<8x32xf32, #tpu.memory_space<vmem>>, vector<8x32xf32>
    %c0_1 = arith.constant 0 : index
    %c0_2 = arith.constant 0 : index
    %1 = vector.load %arg6[%c0_1, %c0_2] : memref<1x32xf32, #tpu.memory_space<vmem>>, vector<1x32xf32>
    %2 = vector.broadcast %1 : vector<1x32xf32> to vector<8x32xf32>
    %3 = arith.mulf %0, %2 : vector<8x32xf32>
    %c0_3 = arith.constant 0 : index
    %c0_4 = arith.constant 0 : index
    %4 = vector.load %arg5[%c0_3, %c0_4] : memref<8x32xf32, #tpu.memory_space<vmem>>, vector<8x32xf32>
    %cst = arith.constant dense<0.000000e+00> : vector<8x8xf32>
    %5 = tpu.matmul %3, %4, %cst {dimension_numbers = #tpu.dot_dimension_numbers<[1], [1], [0], [0], [0, 0, 1, 0], [], []>} : vector<8x32xf32>, vector<8x32xf32>, vector<8x8xf32> -> vector<8x8xf32>
    %c0_i32 = arith.constant 0 : i32
    %6 = arith.cmpi eq, %arg1, %c0_i32 : i32
    %7 = arith.extui %6 : i1 to i32
    %c0_i32_5 = arith.constant 0 : i32
    %8 = arith.cmpi ne, %7, %c0_i32_5 : i32
    scf.if %8 {
      %c0_8 = arith.constant 0 : index
      %c0_9 = arith.constant 0 : index
      %12 = vector.load %arg7[%c0_8, %c0_9] : memref<8x8xf32, #tpu.memory_space<vmem>>, vector<8x8xf32>
      tpu.vector_store %arg7[%c0_8, %c0_9], %5 {strides = array<i32>} : memref<8x8xf32, #tpu.memory_space<vmem>>, vector<8x8xf32>,
    } else {
    }
    %c0_i32_6 = arith.constant 0 : i32
    %9 = arith.cmpi ne, %arg1, %c0_i32_6 : i32
    %10 = arith.extui %9 : i1 to i32
    %c0_i32_7 = arith.constant 0 : i32
    %11 = arith.cmpi ne, %10, %c0_i32_7 : i32
    scf.if %11 {
      %c0_8 = arith.constant 0 : index
      %c0_9 = arith.constant 0 : index
      %12 = vector.load %arg7[%c0_8, %c0_9] : memref<8x8xf32, #tpu.memory_space<vmem>>, vector<8x8xf32>
      %13 = arith.addf %12, %5 : vector<8x8xf32>
      %c0_10 = arith.constant 0 : index
      %c0_11 = arith.constant 0 : index
      %14 = vector.load %arg7[%c0_10, %c0_11] : memref<8x8xf32, #tpu.memory_space<vmem>>, vector<8x8xf32>
      tpu.vector_store %arg7[%c0_10, %c0_11], %13 {strides = array<i32>} : memref<8x8xf32, #tpu.memory_space<vmem>>, vector<8x8xf32>,
    } else {
    }
    return
  }
  func.func @transform_0(%arg0: i32, %arg1: i32, %arg2: memref<1xi32, #tpu.memory_space<smem>>, %arg3: memref<1xi32, #tpu.memory_space<smem>>) -> (i32, i32) {
    %0 = arith.index_cast %arg0 : i32 to index
    %1 = memref.load %arg2[%0] : memref<1xi32, #tpu.memory_space<smem>>
    %c0_i32 = arith.constant 0 : i32
    return %1, %arg1 : i32, i32
  }
  func.func @transform_1(%arg0: i32, %arg1: i32, %arg2: memref<1xi32, #tpu.memory_space<smem>>, %arg3: memref<1xi32, #tpu.memory_space<smem>>) -> (i32, i32) {
    %0 = arith.index_cast %arg0 : i32 to index
    %1 = memref.load %arg3[%0] : memref<1xi32, #tpu.memory_space<smem>>
    %c0_i32 = arith.constant 0 : i32
    return %1, %arg1 : i32, i32
  }
  func.func @transform_2(%arg0: i32, %arg1: i32, %arg2: memref<1xi32, #tpu.memory_space<smem>>, %arg3: memref<1xi32, #tpu.memory_space<smem>>) -> (i32, i32) {
    %c0_i32 = arith.constant 0 : i32
    %c0_i32_0 = arith.constant 0 : i32
    return %c0_i32, %arg1 : i32, i32
  }
  func.func @transform_3(%arg0: i32, %arg1: i32, %arg2: memref<1xi32, #tpu.memory_space<smem>>, %arg3: memref<1xi32, #tpu.memory_space<smem>>) -> (i32, i32) {
    %0 = arith.index_cast %arg0 : i32 to index
    %1 = memref.load %arg2[%0] : memref<1xi32, #tpu.memory_space<smem>>
    %2 = arith.index_cast %arg0 : i32 to index
    %3 = memref.load %arg3[%2] : memref<1xi32, #tpu.memory_space<smem>>
    %c0_i32 = arith.constant 0 : i32
    return %1, %3 : i32, i32
  }
}

</mosaic_0001>

<llo_original>
// kernel: tpu_custom_call.1
$region0: #{tpu_custom_call.1}
  #allocation0 [shape = 'u32[]', space=smem, size = 0x4, offset = 0x4, fixed_abs, tag = 'smem constant byte address 0x4 - core index']
  #allocation1 [shape = 'u32[144,128]{1,0:T(1,128)}', space=vmem, size = 0x12000, scoped, tag = 'internal scratch']
  #allocation2 [shape = 's32[1]{0}', space=sflag, size = 0x4, scoped, tag = 'scoped memory for tpu_custom_call.1']
  #allocation3 [shape = 's32[1]{0:T(128)S(6)}', space=smem, size = 0x200, scoped, tag = 'prefetched SMEM operand 0']
  #allocation4 [shape = 's32[1]{0:T(128)S(6)}', space=smem, size = 0x200, scoped, tag = 'prefetched SMEM operand 1']
  %s0 = inlined_call_operand.<no memory space> [shape: s32[1], index: 0, kind: input, shape index: {}]
  %s1 = inlined_call_operand.<no memory space> [shape: s32[1], index: 1, kind: input, shape index: {}]
  %s2 = inlined_call_operand.hbm [shape: f32[8,32], index: 2, kind: input, shape index: {}]
  %s3 = inlined_call_operand.vmem [shape: f32[8,32], index: 3, kind: input, shape index: {}]
  %s4 = inlined_call_operand.vmem [shape: f32[1,32], index: 4, kind: input, shape index: {}]
  %s5 = inlined_call_operand.hbm [shape: f32[8,8], index: 5, kind: output, shape index: {}]
  %s6 = sld [smem:[#allocation0]]
  $region34: #{tpu_custom_call.1} parent=0
    _
  %s8 = ssub.s32 1, %s6
  %s9 = scalar_select 0, %s8, %s6
  %10 = sst [smem:[#allocation3]] %s0
  %11 = sst [smem:[#allocation4]] %s1
  $region1: #{tpu_custom_call.1} parent=0
    #allocation5 [shape = 'u8[4096]{0}', space=vmem, size = 0x1000, scoped, tag = 'input window, operand 2, single buffered']
    #allocation6 [shape = 's32[1]{0}', space=sflag, size = 0x4, scoped, tag = 'scoped memory for tpu_custom_call.1']
    #allocation7 [shape = 's32[1]{0}', space=sflag, size = 0x4, scoped, tag = 'scoped memory for tpu_custom_call.1']
    #allocation8 [shape = 'u8[4096]{0}', space=vmem, size = 0x1000, scoped, tag = 'output window, operand 0, single buffered']
    %12 = vsyncpa [#allocation6], 0
    %13 = vsyncpa [#allocation7], 0
    // Predicated region
    $region2: #{tpu_custom_call.1} parent=1 // pred_check
      _
    $region3: #{tpu_custom_call.1} parent=1 // pred_check_branch
      %15 = sbr.rel (0) target = $region5
    $region4: #{tpu_custom_call.1} parent=1 // pred_region
      %s16 = sld [smem:[#allocation3]]
      %s18 = ssub.s32 128, 128
      %19 = vsyncadd [#allocation6], %s18
      %s20 = smul.addr %s16, 128
      %s21 = scalar_lea.hbm %s2, %s20
      %s23 = sshll.u32 [#allocation5], 4
      %s24 = int_to_ptr.vmem [resolvable:$true] %s23
      %26 = dma.hbm_to_vmem [thread:$0]  %s21, 128, %s24, [#allocation6]
    $region5: #{tpu_custom_call.1} parent=1 // pred_fallthru
      _
    // Predicated region
    $region6: #{tpu_custom_call.1} parent=1 // pred_check
      _
    $region7: #{tpu_custom_call.1} parent=1 // pred_check_branch
      %28 = sbr.rel (0) target = $region9
    $region8: #{tpu_custom_call.1} parent=1 // pred_region
      %s29 = sld [smem:[#allocation4]]
      %p30 = scmp.lt.s32.totalorder %s29, 0
      %s31 = scalar_select %p30, %s29, 0
      %s32 = smul.addr %s31, 8
      %s33 = scalar_lea.vmem %s3, %s32
      %s34 = sld [smem:[#allocation4]]
    $region9: #{tpu_custom_call.1} parent=1 // pred_fallthru
      _
    // Predicated region
    $region10: #{tpu_custom_call.1} parent=1 // pred_check
      _
    $region11: #{tpu_custom_call.1} parent=1 // pred_check_branch
      %36 = sbr.rel (0) target = $region13
    $region12: #{tpu_custom_call.1} parent=1 // pred_region
      _
    $region13: #{tpu_custom_call.1} parent=1 // pred_fallthru
      _
    // Predicated region
    $region14: #{tpu_custom_call.1} parent=1 // pred_check
      _
    $region15: #{tpu_custom_call.1} parent=1 // pred_check_branch
      %38 = sbr.rel (0) target = $region17
    $region16: #{tpu_custom_call.1} parent=1 // pred_region
      %39 = dma.done [#allocation6], 128
    $region17: #{tpu_custom_call.1} parent=1 // pred_fallthru
      _
    %s40 = sld [smem:[#allocation4]]
    %p41 = scmp.lt.s32.totalorder %s40, 0
    %s42 = scalar_select %p41, %s40, 0
    %s43 = smul.addr %s42, 8
    %s44 = scalar_lea.vmem %s3, %s43
    %s45 = sld [smem:[#allocation3]]
    %s46 = sld [smem:[#allocation4]]
    %p47 = scmp.lt.s32.totalorder %s46, 0
    %s48 = scalar_select %p47, %s46, 0
    %s49 = smul.addr %s48, 8
    %s50 = scalar_lea.vmem %s3, %s49
    %s51 = sld [smem:[#allocation4]]
    %s52 = sld [smem:[#allocation3]]
    %s53 = sld [smem:[#allocation4]]
    %v54 = vld [vmem:[#allocation5] sm:$0xff]
    %v55 = vld [vmem:[%s4] sm:$0x1]
    %v57 = vlaneseq
    %v58 = vshrl.u32 %v57, 7
    %v59 = vsub.s32 0, %v58
    %v60 = vrot.slane %v55, %v59
    %v62 = vmul.f32 %v54, %v60
    %v63 = vld [vmem:[%s50] sm:$0xff]
    %vm64 = vcmask 261120
    %v66 = vsel %vm64, %v62, 0
    %v69 = vsel %vm64, %v63, 0
    %71 = vmatprep.subr.mxu0 0.0
    %72 = vmatpush1.xpose.msra.mxu0 %v69
    %73 = vmatprep.subr.mxu0 0.0
    %74 = vmatpush1.xpose.msra.mxu0 0.0
    %75 = vmatprep.subr.mxu0 0.0
    %76 = vmatpush1.xpose.msra.mxu0 0.0
    %77 = vmatprep.subr.mxu0 0.0
    %78 = vmatpush1.xpose.msra.mxu0 0.0
    %79 = vmatprep.subr.mxu0 0.0
    %80 = vmatpush1.xpose.msra.mxu0 0.0
    %81 = vmatprep.subr.mxu0 0.0
    %82 = vmatpush1.xpose.msra.mxu0 0.0
    %83 = vmatprep.subr.mxu0 0.0
    %84 = vmatpush1.xpose.msra.mxu0 0.0
    %85 = vmatprep.subr.mxu0 0.0
    %86 = vmatpush1.xpose.msra.mxu0 0.0
    %87 = vmatprep.subr.mxu0 0.0
    %88 = vmatpush1.xpose.msra.mxu0 0.0
    %89 = vmatprep.subr.mxu0 0.0
    %90 = vmatpush1.xpose.msra.mxu0 0.0
    %91 = vmatprep.subr.mxu0 0.0
    %92 = vmatpush1.xpose.msra.mxu0 0.0
    %93 = vmatprep.subr.mxu0 0.0
    %94 = vmatpush1.xpose.msra.mxu0 0.0
    %95 = vmatprep.subr.mxu0 0.0
    %96 = vmatpush1.xpose.msra.mxu0 0.0
    %97 = vmatprep.subr.mxu0 0.0
    %98 = vmatpush1.xpose.msra.mxu0 0.0
    %99 = vmatprep.subr.mxu0 0.0
    %100 = vmatpush1.xpose.msra.mxu0 0.0
    %101 = vmatprep.subr.mxu0 0.0
    %102 = vmatpush1.xpose.msra.mxu0 0.0
    %103 = vmatprep.subr.mxu0 0.0
    %104 = vmatpush1.xpose.msra.mxu0 0.0
    %105 = vmatprep.subr.mxu0 0.0
    %106 = vmatpush1.xpose.msra.mxu0 0.0
    %107 = vmatprep.subr.mxu0 0.0
    %108 = vmatpush1.xpose.msra.mxu0 0.0
    %109 = vmatprep.subr.mxu0 0.0
    %110 = vmatpush1.xpose.msra.mxu0 0.0
    %111 = vmatprep.subr.mxu0 0.0
    %112 = vmatpush1.xpose.msra.mxu0 0.0
    %113 = vmatprep.subr.mxu0 0.0
    %114 = vmatpush1.xpose.msra.mxu0 0.0
    %115 = vmatprep.subr.mxu0 0.0
    %116 = vmatpush1.xpose.msra.mxu0 0.0
    %117 = vmatprep.subr.mxu0 0.0
    %118 = vmatpush1.xpose.msra.mxu0 0.0
    %119 = vmatprep.subr.mxu0 0.0
    %120 = vmatpush1.xpose.msra.mxu0 0.0
    %121 = vmatprep.subr.mxu0 0.0
    %122 = vmatpush1.xpose.msra.mxu0 0.0
    %123 = vmatprep.subr.mxu0 0.0
    %124 = vmatpush1.xpose.msra.mxu0 0.0
    %125 = vmatprep.subr.mxu0 0.0
    %126 = vmatpush1.xpose.msra.mxu0 0.0
    %127 = vmatprep.subr.mxu0 0.0
    %128 = vmatpush1.xpose.msra.mxu0 0.0
    %129 = vmatprep.subr.mxu0 0.0
    %130 = vmatpush1.xpose.msra.mxu0 0.0
    %131 = vmatprep.subr.mxu0 0.0
    %132 = vmatpush1.xpose.msra.mxu0 0.0
    %133 = vmatprep.subr.mxu0 0.0
    %134 = vmatpush1.xpose.msra.mxu0 0.0
    %135 = vmatprep.mubr.f32.mxu0 0.0
    %136 = vmatmul.mubr.f32.gmra.mrb[0].mxu0 %v66
    %v137 = vpop.f32.mrb[0].mxu0
    %v138 = vadd.f32 0.0, %v137
    %v139 = vpop.f32.mrb[0].mxu0
    %140 = vdwg.mxu0
    %p141 = scmp.eq.s32.totalorder 0, 0
    // Predicated region
    $region18: #{tpu_custom_call.1} parent=1 // pred_check
      %p142 = pneg %p141
    $region19: #{tpu_custom_call.1} parent=1 // pred_check_branch
      %144 = sbr.rel (%p142) target = $region21
    $region20: #{tpu_custom_call.1} parent=1 // pred_region
      %vm145 = vcmask 64512
      %146 = vst.msk [vmem:[#allocation8] sm:$0xff] %vm145, %v138
    $region21: #{tpu_custom_call.1} parent=1 // pred_fallthru
      _
    %p147 = scmp.ne.s32.totalorder 0, 0
    // Predicated region
    $region22: #{tpu_custom_call.1} parent=1 // pred_check
      %p148 = pneg %p147
    $region23: #{tpu_custom_call.1} parent=1 // pred_check_branch
      %150 = sbr.rel (%p148) target = $region25
    $region24: #{tpu_custom_call.1} parent=1 // pred_region
      %v151 = vld [vmem:[#allocation8] sm:$0xff]
      %v152 = vadd.f32 %v151, %v138
      %vm153 = vcmask 64512
      %154 = vst.msk [vmem:[#allocation8] sm:$0xff] %vm153, %v152
    $region25: #{tpu_custom_call.1} parent=1 // pred_fallthru
      _
    // Predicated region
    $region26: #{tpu_custom_call.1} parent=1 // pred_check
      _
    $region27: #{tpu_custom_call.1} parent=1 // pred_check_branch
      %156 = sbr.rel (0) target = $region29
    $region28: #{tpu_custom_call.1} parent=1 // pred_region
      %s157 = sld [smem:[#allocation3]]
      %s158 = sld [smem:[#allocation4]]
      %s160 = ssub.s32 128, 128
      %161 = vsyncadd [#allocation7], %s160
      %s162 = sadd.s32 %s158, %s157
      %s163 = smul.addr %s162, 128
      %s164 = scalar_lea.hbm %s5, %s163
      %s166 = sshll.u32 [#allocation8], 4
      %s167 = int_to_ptr.vmem [resolvable:$true] %s166
      %169 = dma.vmem_to_hbm [thread:$0]  %s167, 128, %s164, [#allocation7]
    $region29: #{tpu_custom_call.1} parent=1 // pred_fallthru
      _
    // Predicated region
    $region30: #{tpu_custom_call.1} parent=1 // pred_check
      _
    $region31: #{tpu_custom_call.1} parent=1 // pred_check_branch
      %171 = sbr.rel (0) target = $region33
    $region32: #{tpu_custom_call.1} parent=1 // pred_region
      %172 = dma.done [#allocation7], 128
    $region33: #{tpu_custom_call.1} parent=1 // pred_fallthru
      _
    %173 = vsyncpa [#allocation6], 1
    %174 = vsyncpa [#allocation7], 1

</llo_original>
